<compile_context>
chip_gen: v7x
topology: tpu7x:2x2x1
jax: 0.10.0
libtpu: 0.0.40
codegen_flags: <defaults>
</compile_context>

<pallas_src>
import functools

import jax
import jax.numpy as jnp
from jax.experimental import pallas as pl
from jax.experimental.pallas import tpu as pltpu


def _cdiv(a, b):
    return (a + b - 1) // b


def _round_up(x, m):
    return ((x + m - 1) // m) * m


# ----------------------------- kernels --------------------------------------


def _gap_kernel_fullhw(x_ref, o_ref, *, inv_hw):
    # Whole reduction extent lives in this block: sum, scale, store. No scratch.
    s = jnp.sum(x_ref[...], axis=-1, keepdims=True, dtype=jnp.float32)
    o_ref[...] = (s * inv_hw).astype(o_ref.dtype)


def _gap_kernel_tiled(x_ref, o_ref, acc_ref, *, inv_hw, hw, tile_hw):
    # hw is tiled across grid axis 1 (the last, "arbitrary" axis).
    k = pl.program_id(1)

    @pl.when(k == 0)
    def _():
        acc_ref[...] = jnp.zeros_like(acc_ref)

    x = x_ref[...]
    if hw % tile_hw != 0:
        # Ragged last hw block: OOB lanes are undefined -> mask before summing.
        remaining = hw - k * tile_hw
        lane = jax.lax.broadcasted_iota(jnp.int32, x.shape, dimension=1)
        x = jnp.where(lane < remaining, x, jnp.zeros_like(x))
    acc_ref[...] += jnp.sum(x, axis=-1, keepdims=True, dtype=jnp.float32)

    @pl.when(k == pl.num_programs(1) - 1)
    def _():
        o_ref[...] = (acc_ref[...] * inv_hw).astype(o_ref.dtype)


# --------------------------- tile selection ----------------------------------


def _default_target_bytes():
    """Per-generation block budget (double-buffered block must fit scoped VMEM)."""
    try:
        kind = jax.devices()[0].device_kind.lower()
    except Exception:
        kind = ""
    if "v5 lite" in kind or "v5e" in kind or "v5litepod" in kind:
        return 4 << 20      # 2 x 4 MiB fits v5e's 16 MiB scoped default
    if "v6" in kind or "trillium" in kind or "v7" in kind:
        return 12 << 20     # 2 x 12 MiB fits the 32 MiB scoped default
    return 8 << 20


def _choose_tiles(rows, hw, itemsize, target_bytes, min_row_blocks=4):
    """Pick (tile_r, tile_hw); prefer keeping the full reduction extent in-block."""
    if hw * 8 * itemsize <= target_bytes or hw <= 128:
        # Full-hw block: one contiguous DMA per block, k-grid of 1.
        tile_hw = hw
        lane_hw = _round_up(max(hw, 1), 128)
        tile_r = max(8, (target_bytes // (lane_hw * itemsize)) // 8 * 8)
    else:
        # hw too large for a full block: tile it in 128-lane multiples, 8 rows.
        tile_hw = max(128, ((target_bytes // (8 * itemsize)) // 128) * 128)
        # Guaranteed tile_hw < hw here (hw > 128 and hw*8*itemsize > target).
        tile_r = 8
    tile_r = min(tile_r, _round_up(rows, 8))
    # Keep >= min_row_blocks row blocks so the "parallel" axis can shard across
    # v7x's two TensorCores and the pipeline has steps to overlap.
    cap = max(8, _round_up(_cdiv(rows, min_row_blocks), 8))
    tile_r = min(tile_r, cap)
    return tile_r, tile_hw


# ------------------------------ wrapper --------------------------------------


def global_avg_pool2d(x, target_bytes=None):
    """x: (N, C, H, W) -> (N, C, 1, 1), matching F.avg_pool2d(x, x.shape[2:])."""
    N, C, H, W = x.shape
    rows = N * C
    hw = H * W
    itemsize = jnp.dtype(x.dtype).itemsize
    if target_bytes is None:
        target_bytes = _default_target_bytes()

    tile_r, tile_hw = _choose_tiles(rows, hw, itemsize, target_bytes)
    grid = (_cdiv(rows, tile_r), _cdiv(hw, tile_hw))  # reduction (hw) axis last
    inv_hw = 1.0 / float(hw)

    # No padding: ragged row blocks only produce output rows Pallas drops on
    # store; a ragged hw block is masked inside the tiled kernel.
    x2 = x.reshape(rows, hw)

    if tile_hw == hw:  # k-grid == 1: fast path, no accumulator scratch.
        kernel = functools.partial(_gap_kernel_fullhw, inv_hw=inv_hw)
        scratch = []
    else:
        kernel = functools.partial(
            _gap_kernel_tiled, inv_hw=inv_hw, hw=hw, tile_hw=tile_hw)
        scratch = [pltpu.VMEM((tile_r, 1), jnp.float32)]

    # Only raise the scoped VMEM limit if the double-buffered block could
    # exceed the smallest (v5e) default; stay well under v7x's 64 MiB physical.
    block_bytes = tile_r * _round_up(max(tile_hw, 1), 128) * itemsize
    vmem_budget = 2 * block_bytes + (4 << 20)
    vmem_limit = None
    if vmem_budget > (16 << 20):
        vmem_limit = int(min(max(vmem_budget, 32 << 20), 48 << 20))

    out2 = pl.pallas_call(
        kernel,
        out_shape=jax.ShapeDtypeStruct((rows, 1), x.dtype),
        grid_spec=pltpu.PrefetchScalarGridSpec(
            num_scalar_prefetch=0,
            grid=grid,
            in_specs=[pl.BlockSpec((tile_r, tile_hw), lambda i, k: (i, k))],
            out_specs=pl.BlockSpec((tile_r, 1), lambda i, k: (i, 0)),
            scratch_shapes=scratch,
        ),
        compiler_params=pltpu.CompilerParams(
            dimension_semantics=("parallel", "arbitrary"),
            vmem_limit_bytes=vmem_limit,
        ),
        cost_estimate=pl.CostEstimate(
            flops=rows * hw,
            transcendentals=0,
            bytes_accessed=rows * hw * itemsize + rows * itemsize,
        ),
    )(x2)

    return out2.reshape(N, C, 1, 1)


if __name__ == "__main__":
    key = jax.random.PRNGKey(0)
    x = jax.random.normal(key, (2, 4, 16, 16), dtype=jnp.float32)
    out = global_avg_pool2d(x)
    jax.block_until_ready(out)
    ref = jnp.mean(x, axis=(2, 3), keepdims=True)
    assert out.shape == (2, 4, 1, 1)
    assert jnp.allclose(out, ref, atol=1e-5, rtol=1e-5)

    # Ragged rows (15 % 8 != 0) + non-128-multiple hw on the full-hw fast path.
    x2 = jax.random.normal(jax.random.PRNGKey(1), (3, 5, 7, 7), dtype=jnp.float32)
    out2 = global_avg_pool2d(x2)
    jax.block_until_ready(out2)
    ref2 = jnp.mean(x2, axis=(2, 3), keepdims=True)
    assert out2.shape == (3, 5, 1, 1)
    assert jnp.allclose(out2, ref2, atol=1e-5, rtol=1e-5)

    # Force the hw-tiled accumulate path + ragged-hw in-kernel mask (k-grid > 1).
    x3 = jax.random.normal(jax.random.PRNGKey(2), (2, 3, 20, 20), dtype=jnp.float32)
    out3 = global_avg_pool2d(x3, target_bytes=4096)
    jax.block_until_ready(out3)
    ref3 = jnp.mean(x3, axis=(2, 3), keepdims=True)
    assert out3.shape == (2, 3, 1, 1)
    assert jnp.allclose(out3, ref3, atol=1e-5, rtol=1e-5)

    print("KERNEL_OK")
</pallas_src>

<mosaic_0001>
module attributes {stable_mosaic.version = 11 : i64} {
  func.func @_gap_kernel_fullhw(%arg0: i32, %arg1: i32, %arg2: memref<8x256xf32, #tpu.memory_space<vmem>>, %arg3: memref<8x1xf32, #tpu.memory_space<vmem>>) attributes {dimension_semantics = [#tpu.dimension_semantics<parallel>, #tpu.dimension_semantics<arbitrary>], iteration_bounds = array<i64: 1, 1>, scalar_prefetch = 0 : i64, scratch_operands = 0 : i64, tpu.core_type = #tpu.core_type<tc>, window_params = [{transform_indices = @transform_0, window_bounds = array<i64: 8, 256>}, {transform_indices = @transform_1, window_bounds = array<i64: 8, 1>}]} {
    %c0 = arith.constant 0 : index
    %c0_0 = arith.constant 0 : index
    %0 = vector.load %arg2[%c0, %c0_0] : memref<8x256xf32, #tpu.memory_space<vmem>>, vector<8x256xf32>
    %cst = arith.constant dense<0.000000e+00> : vector<8xf32>
    %1 = vector.multi_reduction <add>, %0, %cst [1] : vector<8x256xf32> to vector<8xf32>
    %2 = vector.shape_cast %1 : vector<8xf32> to vector<8x1xf32>
    %cst_1 = arith.constant 3.906250e-03 : f32
    %3 = vector.broadcast %cst_1 : f32 to vector<8x1xf32>
    %4 = arith.mulf %2, %3 : vector<8x1xf32>
    %c0_2 = arith.constant 0 : index
    %c0_3 = arith.constant 0 : index
    %5 = vector.load %arg3[%c0_2, %c0_3] : memref<8x1xf32, #tpu.memory_space<vmem>>, vector<8x1xf32>
    tpu.vector_store %arg3[%c0_2, %c0_3], %4 {strides = array<i32>} : memref<8x1xf32, #tpu.memory_space<vmem>>, vector<8x1xf32>,
    return
  }
  func.func @transform_0(%arg0: i32, %arg1: i32) -> (i32, i32) {
    %c0_i32 = arith.constant 0 : i32
    return %arg0, %arg1 : i32, i32
  }
  func.func @transform_1(%arg0: i32, %arg1: i32) -> (i32, i32) {
    %c0_i32 = arith.constant 0 : i32
    %c0_i32_0 = arith.constant 0 : i32
    return %arg0, %c0_i32 : i32, i32
  }
}

</mosaic_0001>

<llo_original>
// kernel: tpu_custom_call.1
$region0: #{tpu_custom_call.1}
  #allocation0 [shape = 'u32[]', space=smem, size = 0x4, offset = 0x4, fixed_abs, tag = 'smem constant byte address 0x4 - core index']
  #allocation1 [shape = 'u32[144,128]{1,0:T(1,128)}', space=vmem, size = 0x12000, scoped, tag = 'internal scratch']
  %s0 = inlined_call_operand.hbm [shape: f32[8,256], index: 0, kind: input, shape index: {}]
  %s1 = inlined_call_operand.vmem [shape: f32[8,1], index: 1, kind: output, shape index: {}]
  %s2 = sld [smem:[#allocation0]]
  $region18: #{tpu_custom_call.1} parent=0
    _
  %s4 = ssub.s32 1, %s2
  %s5 = scalar_select 0, %s4, %s2
  $region1: #{tpu_custom_call.1} parent=0
    #allocation2 [shape = 'u8[8192]{0}', space=vmem, size = 0x2000, scoped, tag = 'input window, operand 0, single buffered']
    #allocation3 [shape = 's32[1]{0}', space=sflag, size = 0x4, scoped, tag = 'scoped memory for tpu_custom_call.1']
    %6 = vsyncpa [#allocation3], 0
    // Predicated region
    $region2: #{tpu_custom_call.1} parent=1 // pred_check
      _
    $region3: #{tpu_custom_call.1} parent=1 // pred_check_branch
      %8 = sbr.rel (0) target = $region5
    $region4: #{tpu_custom_call.1} parent=1 // pred_region
      %s10 = ssub.s32 256, 256
      %11 = vsyncadd [#allocation3], %s10
      %s13 = sshll.u32 [#allocation2], 4
      %s14 = int_to_ptr.vmem [resolvable:$true] %s13
      %16 = dma.hbm_to_vmem [thread:$0]  %s0, 256, %s14, [#allocation3]
    $region5: #{tpu_custom_call.1} parent=1 // pred_fallthru
      _
    // Predicated region
    $region6: #{tpu_custom_call.1} parent=1 // pred_check
      _
    $region7: #{tpu_custom_call.1} parent=1 // pred_check_branch
      %18 = sbr.rel (0) target = $region9
    $region8: #{tpu_custom_call.1} parent=1 // pred_region
      %19 = dma.done [#allocation3], 256
    $region9: #{tpu_custom_call.1} parent=1 // pred_fallthru
      _
    %v20 = vld [vmem:[#allocation2] sm:$0xff]
    %v21 = vld [vmem:[#allocation2 + $0x8] sm:$0xff]
    %v22 = vadd.f32 %v20, %v21
    %23 = vadd.xlane.f32.xlu0 %v22
    %v24 = vpop.xlane.xlu0 %23
    %v25 = vmul.f32 %v24, 0.00390625
    %vm26 = vcmask 7168
    %27 = vst.msk [vmem:[%s1] sm:$0xff] %vm26, %v25
    // Predicated region
    $region10: #{tpu_custom_call.1} parent=1 // pred_check
      _
    $region11: #{tpu_custom_call.1} parent=1 // pred_check_branch
      %29 = sbr.rel (0) target = $region13
    $region12: #{tpu_custom_call.1} parent=1 // pred_region
      _
    $region13: #{tpu_custom_call.1} parent=1 // pred_fallthru
      _
    // Predicated region
    $region14: #{tpu_custom_call.1} parent=1 // pred_check
      _
    $region15: #{tpu_custom_call.1} parent=1 // pred_check_branch
      %31 = sbr.rel (0) target = $region17
    $region16: #{tpu_custom_call.1} parent=1 // pred_region
      _
    $region17: #{tpu_custom_call.1} parent=1 // pred_fallthru
      _
    %32 = vsyncpa [#allocation3], 1

</llo_original>
